<compile_context>
chip_gen: v7x
topology: tpu7x:2x2x1
jax: 0.10.0
libtpu: 0.0.40
codegen_flags: <defaults>
</compile_context>

<pallas_src>
import functools
import math

import jax
import jax.numpy as jnp
from jax.experimental import pallas as pl
from jax.experimental.pallas import tpu as pltpu


def _round_up(x, m):
    return ((x + m - 1) // m) * m


def _vmem_cap_bytes():
    try:
        return int(pltpu.get_tpu_info().vmem_capacity_bytes)
    except Exception:
        return 64 << 20  # conservative fallback: v7x per-TensorCore VMEM


def _pick_tk(d):
    """Largest hidden-dim tile that is a multiple of 128, divides D, and is <= 1024."""
    if d % 128 != 0:
        return d
    tk = min(d, 1024)
    while d % tk != 0:
        tk -= 128
    return tk


# ----------------------------------------------------------------------------- kernels


def resmlp_resident_kernel(x_ref, w1_ref, b1_ref, w2_ref, b2_ref, o_ref):
    """Whole (D, D) weights resident in VMEM; one token tile per grid step."""
    x = x_ref[...].astype(jnp.float32)
    inv_d = 1.0 / x.shape[-1]

    # LayerNorm (eps = 1e-6); gamma/beta are pre-folded into w1/b1 by the wrapper.
    # sum / sum-of-squares form: both cross-lane reductions issue back-to-back and no
    # long-lived `centered` temporary is kept around (less vreg/VMEM spill pressure).
    mean = jnp.sum(x, axis=-1, keepdims=True) * inv_d
    var = jnp.maximum(jnp.sum(x * x, axis=-1, keepdims=True) * inv_d - mean * mean, 0.0)
    xn = (x - mean) * jax.lax.rsqrt(var + 1e-6)

    # fc_1 + ReLU: low-precision operands into the MXU, f32 accumulation.
    h = jnp.dot(xn.astype(w1_ref.dtype), w1_ref[...], preferred_element_type=jnp.float32)
    h = jnp.maximum(h + b1_ref[...], 0.0)

    # fc_2 + bias + residual fused into the store; x_ref is re-read here instead of
    # keeping the f32 copy of x live across both matmuls (bounds live ranges).
    o_ref[...] = (
        jnp.dot(h.astype(w2_ref.dtype), w2_ref[...], preferred_element_type=jnp.float32)
        + b2_ref[...]
        + x_ref[...].astype(jnp.float32)
    ).astype(o_ref.dtype)


def resmlp_tiled_kernel(x_ref, w1_ref, b1_ref, w2_ref, b2_ref, o_ref, xn_ref, acc_ref):
    """Weight-tiled fallback: grid axis k tiles the hidden dim; weight tiles are streamed."""
    k = pl.program_id(1)

    @pl.when(k == 0)
    def _():
        x = x_ref[...].astype(jnp.float32)
        inv_d = 1.0 / x.shape[-1]
        mean = jnp.sum(x, axis=-1, keepdims=True) * inv_d
        var = jnp.maximum(jnp.sum(x * x, axis=-1, keepdims=True) * inv_d - mean * mean, 0.0)
        xn_ref[...] = ((x - mean) * jax.lax.rsqrt(var + 1e-6)).astype(xn_ref.dtype)
        acc_ref[...] = jnp.zeros_like(acc_ref)

    # fc_1 column-tile + ReLU, then accumulate the matching fc_2 row-tile contribution.
    h = jnp.dot(xn_ref[...], w1_ref[...], preferred_element_type=jnp.float32)
    h = jnp.maximum(h + b1_ref[...], 0.0)
    acc_ref[...] += jnp.dot(h.astype(w2_ref.dtype), w2_ref[...],
                            preferred_element_type=jnp.float32)

    @pl.when(k == pl.num_programs(1) - 1)
    def _():
        o_ref[...] = (acc_ref[...] + b2_ref[...]
                      + x_ref[...].astype(jnp.float32)).astype(o_ref.dtype)


# ----------------------------------------------------------------------------- wrapper


def resmlp_forward(x, gamma, beta, w1, b1, w2, b2, *, tm=None, force_weight_tiling=False):
    """ResMLP forward (eval mode: dropout = identity).

    x: (..., D).  w1/w2 stored as (D_in, D_out) == PyTorch weight.T (bf16 preferred).
    gamma/beta (LayerNorm affine) are folded into w1/b1 on the host.
    """
    orig_shape = x.shape
    D = orig_shape[-1]
    x2 = x.reshape(-1, D)
    N = x2.shape[0]

    # --- fold LN affine into fc_1:  (xn*g + b) @ W1 + b1 == xn @ (diag(g) W1) + (b @ W1 + b1)
    g = gamma.reshape(-1).astype(jnp.float32)
    bta = beta.reshape(-1).astype(jnp.float32)
    w1_f32 = w1.astype(jnp.float32)
    w1f = (g[:, None] * w1_f32).astype(w1.dtype)
    b1f = b1.reshape(1, -1).astype(jnp.float32) + bta[None, :] @ w1_f32
    b2f = b2.reshape(1, -1).astype(jnp.float32)

    x_bytes = jnp.dtype(x.dtype).itemsize
    w_bytes = jnp.dtype(w1.dtype).itemsize

    # --- token tile: target ~1 MiB of x bytes per grid step (mem-bound regime), clamped to
    #     [256, 2048] and a multiple of 256 (MXU-friendly). bf16 packs 16 rows per vreg, so
    #     tm stays a multiple of 16 (8 for f32).  No whole-array pad/slice: the grid uses
    #     cdiv and Pallas masks the partial last block.
    min_tm = 16 if x_bytes < 4 else 8
    if tm is None:
        tm = (1 << 20) // max(1, D * x_bytes)
        tm = max(256, min(2048, _round_up(max(tm, 1), 256)))
    tm = min(_round_up(tm, min_tm), _round_up(N, min_tm))
    # v7x megacore: make sure the "parallel" token axis has >= 2 steps when N allows,
    # so the grid shards across both TensorCores.
    if pl.cdiv(N, tm) < 2 and N > min_tm:
        tm = max(min_tm, _round_up(pl.cdiv(N, 2), min_tm))

    cap = _vmem_cap_bytes()
    budget = int(cap * 0.8)

    def need_resident(tm_):
        return (4 * tm_ * D * x_bytes          # x + out tiles, double-buffered
                + 2 * D * D * w_bytes          # w1 + w2 resident (single-buffered)
                + 5 * tm_ * D * 4              # f32 intermediates headroom
                + 64 * D * 4)                  # (1, D) bias rows (padded)

    def need_tiled(tm_, tk_):
        return (4 * tm_ * D * x_bytes          # x + out tiles, double-buffered
                + 4 * D * tk_ * w_bytes        # w1/w2 tiles, double-buffered
                + tm_ * D * (w_bytes + 4)      # xn + acc scratch
                + 2 * tm_ * max(tk_, D) * 4    # f32 intermediates headroom
                + 64 * max(tk_, D) * 4)

    use_tiled = force_weight_tiling or (2 * D * D * w_bytes + (16 << 20) > budget)
    tk = D
    if not use_tiled:
        while tm > 256 and need_resident(tm) > budget:
            tm = _round_up(max(256, tm // 2), min_tm)
        use_tiled = need_resident(tm) > budget
    if use_tiled:
        tk = _pick_tk(D)
        while tm > 256 and need_tiled(tm, tk) > budget:
            tm = _round_up(max(256, tm // 2), min_tm)
        need = need_tiled(tm, tk)
    else:
        need = need_resident(tm)

    grid_m = pl.cdiv(N, tm)
    # Explicit scoped-VMEM budget derived from `need` (v5e default scoped VMEM is only
    # 16 MiB), capped below physical VMEM per TensorCore.
    vmem_limit = int(min(max(need + (8 << 20), 32 << 20), int(cap * 0.9)))

    # Constant-index blocks: single-buffer so they don't pay the default 2x buffering cost.
    resident = functools.partial(pl.BlockSpec, pipeline_mode=pl.Buffered(1))

    if not use_tiled:
        out = pl.pallas_call(
            resmlp_resident_kernel,
            out_shape=jax.ShapeDtypeStruct((N, D), x.dtype),
            grid_spec=pltpu.PrefetchScalarGridSpec(
                num_scalar_prefetch=0,
                grid=(grid_m,),
                in_specs=[
                    pl.BlockSpec((tm, D), lambda i: (i, 0)),   # x (double-buffered)
                    resident((D, D), lambda i: (0, 0)),        # w1 (gamma folded in)
                    resident((1, D), lambda i: (0, 0)),        # b1 (beta folded in)
                    resident((D, D), lambda i: (0, 0)),        # w2
                    resident((1, D), lambda i: (0, 0)),        # b2
                ],
                out_specs=pl.BlockSpec((tm, D), lambda i: (i, 0)),
            ),
            compiler_params=pltpu.CompilerParams(
                dimension_semantics=("parallel",),
                vmem_limit_bytes=vmem_limit,
            ),
        )(x2, w1f, b1f, w2, b2f)
    else:
        out = pl.pallas_call(
            resmlp_tiled_kernel,
            out_shape=jax.ShapeDtypeStruct((N, D), x.dtype),
            grid_spec=pltpu.PrefetchScalarGridSpec(
                num_scalar_prefetch=0,
                grid=(grid_m, D // tk),
                in_specs=[
                    pl.BlockSpec((tm, D), lambda i, k: (i, 0)),   # x (resident across k)
                    pl.BlockSpec((D, tk), lambda i, k: (0, k)),   # w1 column tile
                    pl.BlockSpec((1, tk), lambda i, k: (0, k)),   # b1 tile
                    pl.BlockSpec((tk, D), lambda i, k: (k, 0)),   # w2 row tile
                    resident((1, D), lambda i, k: (0, 0)),        # b2
                ],
                out_specs=pl.BlockSpec((tm, D), lambda i, k: (i, 0)),
                scratch_shapes=[
                    pltpu.VMEM((tm, D), w1.dtype),     # normalized activations
                    pltpu.VMEM((tm, D), jnp.float32),  # fc_2 accumulator
                ],
            ),
            compiler_params=pltpu.CompilerParams(
                dimension_semantics=("parallel", "arbitrary"),
                vmem_limit_bytes=vmem_limit,
            ),
        )(x2, w1f, b1f, w2, b2f)

    return out.reshape(orig_shape)


def resmlp_reference(x, gamma, beta, w1, b1, w2, b2):
    """Pure-JAX reference mirroring the module semantics (un-fused gamma/beta, f32 LN,
    matmul operands in the weights' dtype, f32 accumulation)."""
    xf = x.astype(jnp.float32)
    mean = jnp.mean(xf, axis=-1, keepdims=True)
    var = jnp.mean((xf - mean) ** 2, axis=-1, keepdims=True)
    xn = (xf - mean) * jax.lax.rsqrt(var + 1e-6) * gamma + beta
    h = jnp.dot(xn.astype(w1.dtype), w1, preferred_element_type=jnp.float32) + b1
    h = jnp.maximum(h, 0.0)
    y = jnp.dot(h.astype(w2.dtype), w2, preferred_element_type=jnp.float32) + b2
    return (y + xf).astype(x.dtype)


if __name__ == "__main__":
    key = jax.random.PRNGKey(0)
    batch, seq, model_dim = 2, 8, 128
    keys = jax.random.split(key, 7)

    # bf16 activations: halves HBM read/write traffic for this memory-bound kernel.
    x = jax.random.normal(keys[0], (batch, seq, model_dim), jnp.float32).astype(jnp.bfloat16)

    bound = 1.0 / math.sqrt(model_dim)
    # Weights stored as (D_in, D_out) == PyTorch weight.T; bf16 for MXU throughput + VMEM.
    w1 = jax.random.uniform(keys[1], (model_dim, model_dim), jnp.float32,
                            -bound, bound).astype(jnp.bfloat16)
    b1 = jax.random.uniform(keys[2], (1, model_dim), jnp.float32, -bound, bound)
    w2 = jax.random.uniform(keys[3], (model_dim, model_dim), jnp.float32,
                            -bound, bound).astype(jnp.bfloat16)
    b2 = jax.random.uniform(keys[4], (1, model_dim), jnp.float32, -bound, bound)
    # Non-trivial LayerNorm affine so the gamma/beta fold is actually exercised.
    gamma = 1.0 + 0.1 * jax.random.normal(keys[5], (1, model_dim), jnp.float32)
    beta = 0.1 * jax.random.normal(keys[6], (1, model_dim), jnp.float32)

    ref = resmlp_reference(x, gamma, beta, w1, b1, w2, b2).astype(jnp.float32)

    # Default path (resident (D, D) weights in VMEM).
    out = resmlp_forward(x, gamma, beta, w1, b1, w2, b2)
    jax.block_until_ready(out)
    assert out.shape == x.shape and out.dtype == x.dtype
    assert jnp.allclose(out.astype(jnp.float32), ref, atol=6e-2, rtol=6e-2), \
        "mismatch vs reference (resident path)"

    # Weight-tiled fallback (auto-selected when the (D, D) weights don't fit VMEM, e.g.
    # large D on v7x's 64 MiB/TC); exercised explicitly here to validate it end-to-end.
    out_tiled = resmlp_forward(x, gamma, beta, w1, b1, w2, b2, force_weight_tiling=True)
    jax.block_until_ready(out_tiled)
    assert jnp.allclose(out_tiled.astype(jnp.float32), ref, atol=6e-2, rtol=6e-2), \
        "mismatch vs reference (tiled path)"

    print("KERNEL_OK")
</pallas_src>

<mosaic_0001>
module attributes {stable_mosaic.version = 11 : i64} {
  func.func @resmlp_resident_kernel(%arg0: i32, %arg1: memref<16x128xbf16, #tpu.memory_space<vmem>>, %arg2: memref<128x128xbf16, #tpu.memory_space<vmem>>, %arg3: memref<1x128xf32, #tpu.memory_space<vmem>>, %arg4: memref<128x128xbf16, #tpu.memory_space<vmem>>, %arg5: memref<1x128xf32, #tpu.memory_space<vmem>>, %arg6: memref<16x128xbf16, #tpu.memory_space<vmem>>) attributes {dimension_semantics = [#tpu.dimension_semantics<parallel>], iteration_bounds = array<i64: 1>, scalar_prefetch = 0 : i64, scratch_operands = 0 : i64, tpu.core_type = #tpu.core_type<tc>, window_params = [{transform_indices = @transform_0, window_bounds = array<i64: 16, 128>}, {pipeline_mode = #tpu.pipeline_mode<synchronous>, transform_indices = @transform_1, window_bounds = array<i64: 128, 128>}, {pipeline_mode = #tpu.pipeline_mode<synchronous>, transform_indices = @transform_2, window_bounds = array<i64: 1, 128>}, {pipeline_mode = #tpu.pipeline_mode<synchronous>, transform_indices = @transform_3, window_bounds = array<i64: 128, 128>}, {pipeline_mode = #tpu.pipeline_mode<synchronous>, transform_indices = @transform_4, window_bounds = array<i64: 1, 128>}, {transform_indices = @transform_5, window_bounds = array<i64: 16, 128>}]} {
    %c0 = arith.constant 0 : index
    %c0_0 = arith.constant 0 : index
    %0 = vector.load %arg1[%c0, %c0_0] : memref<16x128xbf16, #tpu.memory_space<vmem>>, vector<16x128xbf16>
    %1 = arith.extf %0 : vector<16x128xbf16> to vector<16x128xf32>
    %cst = arith.constant dense<0.000000e+00> : vector<16xf32>
    %2 = vector.multi_reduction <add>, %1, %cst [1] : vector<16x128xf32> to vector<16xf32>
    %3 = vector.shape_cast %2 : vector<16xf32> to vector<16x1xf32>
    %cst_1 = arith.constant 7.812500e-03 : f32
    %4 = vector.broadcast %cst_1 : f32 to vector<16x1xf32>
    %5 = arith.mulf %3, %4 : vector<16x1xf32>
    %6 = arith.mulf %1, %1 : vector<16x128xf32>
    %cst_2 = arith.constant dense<0.000000e+00> : vector<16xf32>
    %7 = vector.multi_reduction <add>, %6, %cst_2 [1] : vector<16x128xf32> to vector<16xf32>
    %8 = vector.shape_cast %7 : vector<16xf32> to vector<16x1xf32>
    %cst_3 = arith.constant 7.812500e-03 : f32
    %9 = vector.broadcast %cst_3 : f32 to vector<16x1xf32>
    %10 = arith.mulf %8, %9 : vector<16x1xf32>
    %11 = arith.mulf %5, %5 : vector<16x1xf32>
    %12 = arith.subf %10, %11 : vector<16x1xf32>
    %cst_4 = arith.constant 0.000000e+00 : f32
    %13 = vector.broadcast %cst_4 : f32 to vector<16x1xf32>
    %14 = arith.maximumf %12, %13 : vector<16x1xf32>
    %15 = vector.broadcast %5 : vector<16x1xf32> to vector<16x128xf32>
    %16 = arith.subf %1, %15 : vector<16x128xf32>
    %cst_5 = arith.constant 9.99999997E-7 : f32
    %17 = vector.broadcast %cst_5 : f32 to vector<16x1xf32>
    %18 = arith.addf %14, %17 : vector<16x1xf32>
    %19 = math.rsqrt %18 : vector<16x1xf32>
    %20 = vector.broadcast %19 : vector<16x1xf32> to vector<16x128xf32>
    %21 = arith.mulf %16, %20 : vector<16x128xf32>
    %22 = arith.truncf %21 : vector<16x128xf32> to vector<16x128xbf16>
    %c0_6 = arith.constant 0 : index
    %c0_7 = arith.constant 0 : index
    %23 = vector.load %arg2[%c0_6, %c0_7] : memref<128x128xbf16, #tpu.memory_space<vmem>>, vector<128x128xbf16>
    %cst_8 = arith.constant dense<0.000000e+00> : vector<16x128xf32>
    %24 = tpu.matmul %22, %23, %cst_8 {dimension_numbers = #tpu.dot_dimension_numbers<[1], [0], [0], [1], [0, 0, 1, 1], [], []>} : vector<16x128xbf16>, vector<128x128xbf16>, vector<16x128xf32> -> vector<16x128xf32>
    %c0_9 = arith.constant 0 : index
    %c0_10 = arith.constant 0 : index
    %25 = vector.load %arg3[%c0_9, %c0_10] : memref<1x128xf32, #tpu.memory_space<vmem>>, vector<1x128xf32>
    %26 = vector.broadcast %25 : vector<1x128xf32> to vector<16x128xf32>
    %27 = arith.addf %24, %26 : vector<16x128xf32>
    %cst_11 = arith.constant 0.000000e+00 : f32
    %28 = vector.broadcast %cst_11 : f32 to vector<16x128xf32>
    %29 = arith.maximumf %27, %28 : vector<16x128xf32>
    %30 = arith.truncf %29 : vector<16x128xf32> to vector<16x128xbf16>
    %c0_12 = arith.constant 0 : index
    %c0_13 = arith.constant 0 : index
    %31 = vector.load %arg4[%c0_12, %c0_13] : memref<128x128xbf16, #tpu.memory_space<vmem>>, vector<128x128xbf16>
    %cst_14 = arith.constant dense<0.000000e+00> : vector<16x128xf32>
    %32 = tpu.matmul %30, %31, %cst_14 {dimension_numbers = #tpu.dot_dimension_numbers<[1], [0], [0], [1], [0, 0, 1, 1], [], []>} : vector<16x128xbf16>, vector<128x128xbf16>, vector<16x128xf32> -> vector<16x128xf32>
    %c0_15 = arith.constant 0 : index
    %c0_16 = arith.constant 0 : index
    %33 = vector.load %arg5[%c0_15, %c0_16] : memref<1x128xf32, #tpu.memory_space<vmem>>, vector<1x128xf32>
    %34 = vector.broadcast %33 : vector<1x128xf32> to vector<16x128xf32>
    %35 = arith.addf %32, %34 : vector<16x128xf32>
    %c0_17 = arith.constant 0 : index
    %c0_18 = arith.constant 0 : index
    %36 = vector.load %arg1[%c0_17, %c0_18] : memref<16x128xbf16, #tpu.memory_space<vmem>>, vector<16x128xbf16>
    %37 = arith.extf %36 : vector<16x128xbf16> to vector<16x128xf32>
    %38 = arith.addf %35, %37 : vector<16x128xf32>
    %39 = arith.truncf %38 : vector<16x128xf32> to vector<16x128xbf16>
    %c0_19 = arith.constant 0 : index
    %c0_20 = arith.constant 0 : index
    %40 = vector.load %arg6[%c0_19, %c0_20] : memref<16x128xbf16, #tpu.memory_space<vmem>>, vector<16x128xbf16>
    tpu.vector_store %arg6[%c0_19, %c0_20], %39 {strides = array<i32>} : memref<16x128xbf16, #tpu.memory_space<vmem>>, vector<16x128xbf16>,
    return
  }
  func.func @transform_0(%arg0: i32) -> (i32, i32) {
    %c0_i32 = arith.constant 0 : i32
    %c0_i32_0 = arith.constant 0 : i32
    return %arg0, %c0_i32 : i32, i32
  }
  func.func @transform_1(%arg0: i32) -> (i32, i32) {
    %c0_i32 = arith.constant 0 : i32
    %c0_i32_0 = arith.constant 0 : i32
    %c0_i32_1 = arith.constant 0 : i32
    return %c0_i32, %c0_i32_0 : i32, i32
  }
  func.func @transform_2(%arg0: i32) -> (i32, i32) {
    %c0_i32 = arith.constant 0 : i32
    %c0_i32_0 = arith.constant 0 : i32
    %c0_i32_1 = arith.constant 0 : i32
    return %c0_i32, %c0_i32_0 : i32, i32
  }
  func.func @transform_3(%arg0: i32) -> (i32, i32) {
    %c0_i32 = arith.constant 0 : i32
    %c0_i32_0 = arith.constant 0 : i32
    %c0_i32_1 = arith.constant 0 : i32
    return %c0_i32, %c0_i32_0 : i32, i32
  }
  func.func @transform_4(%arg0: i32) -> (i32, i32) {
    %c0_i32 = arith.constant 0 : i32
    %c0_i32_0 = arith.constant 0 : i32
    %c0_i32_1 = arith.constant 0 : i32
    return %c0_i32, %c0_i32_0 : i32, i32
  }
  func.func @transform_5(%arg0: i32) -> (i32, i32) {
    %c0_i32 = arith.constant 0 : i32
    %c0_i32_0 = arith.constant 0 : i32
    return %arg0, %c0_i32 : i32, i32
  }
}

</mosaic_0001>

<llo_original>
// kernel: tpu_custom_call.1
$region0: #{tpu_custom_call.1}
  #allocation0 [shape = 'u32[]', space=smem, size = 0x4, offset = 0x4, fixed_abs, tag = 'smem constant byte address 0x4 - core index']
  #allocation1 [shape = 'u32[144,128]{1,0:T(1,128)}', space=vmem, size = 0x12000, scoped, tag = 'internal scratch']
  %s0 = inlined_call_operand.hbm [shape: bf16[16,128], index: 0, kind: input, shape index: {}]
  %s1 = inlined_call_operand.hbm [shape: bf16[128,128], index: 1, kind: input, shape index: {}]
  %s2 = inlined_call_operand.vmem [shape: f32[1,128], index: 2, kind: input, shape index: {}]
  %s3 = inlined_call_operand.hbm [shape: bf16[128,128], index: 3, kind: input, shape index: {}]
  %s4 = inlined_call_operand.vmem [shape: f32[1,128], index: 4, kind: input, shape index: {}]
  %s5 = inlined_call_operand.hbm [shape: bf16[16,128], index: 5, kind: output, shape index: {}]
  %s6 = sld [smem:[#allocation0]]
  $region42: #{tpu_custom_call.1} parent=0
    _
  %s8 = ssub.s32 1, %s6
  %s9 = scalar_select 0, %s8, %s6
  $region1: #{tpu_custom_call.1} parent=0
    #allocation2 [shape = 'u8[4096]{0}', space=vmem, size = 0x1000, scoped, tag = 'input window, operand 0, single buffered']
    #allocation3 [shape = 's32[1]{0}', space=sflag, size = 0x4, scoped, tag = 'scoped memory for tpu_custom_call.1']
    #allocation4 [shape = 's32[1]{0}', space=sflag, size = 0x4, scoped, tag = 'scoped memory for tpu_custom_call.1']
    #allocation5 [shape = 'u8[32768]{0}', space=vmem, size = 0x8000, scoped, tag = 'input window, operand 1, single buffered']
    #allocation6 [shape = 's32[1]{0}', space=sflag, size = 0x4, scoped, tag = 'scoped memory for tpu_custom_call.1']
    #allocation7 [shape = 'u8[32768]{0}', space=vmem, size = 0x8000, scoped, tag = 'input window, operand 3, single buffered']
    #allocation8 [shape = 'u8[4096]{0}', space=vmem, size = 0x1000, scoped, tag = 'output window, operand 0, single buffered']
    %10 = vsyncpa [#allocation3], 0
    %11 = vsyncpa [#allocation6], 0
    %12 = vsyncpa [#allocation4], 0
    // Predicated region
    $region2: #{tpu_custom_call.1} parent=1 // pred_check
      _
    $region3: #{tpu_custom_call.1} parent=1 // pred_check_branch
      %14 = sbr.rel (0) target = $region5
    $region4: #{tpu_custom_call.1} parent=1 // pred_region
      %s16 = ssub.s32 128, 128
      %17 = vsyncadd [#allocation3], %s16
      %s18 = sshll.u32 [#allocation2], 4
      %s19 = int_to_ptr.vmem [resolvable:$true] %s18
      %24 = dma.hbm_to_vmem [thread:$0]  %s0, 128, %s19, [#allocation3], 64, 64, 4
    $region5: #{tpu_custom_call.1} parent=1 // pred_fallthru
      _
    // Predicated region
    $region6: #{tpu_custom_call.1} parent=1 // pred_check
      _
    $region7: #{tpu_custom_call.1} parent=1 // pred_check_branch
      %26 = sbr.rel (0) target = $region9
    $region8: #{tpu_custom_call.1} parent=1 // pred_region
      %s28 = ssub.s32 1024, 1024
      %29 = vsyncadd [#allocation6], %s28
      %s30 = sshll.u32 [#allocation5], 4
      %s31 = int_to_ptr.vmem [resolvable:$true] %s30
      %36 = dma.hbm_to_vmem [thread:$0]  %s1, 1024, %s31, [#allocation6], 64, 64, 4
    $region9: #{tpu_custom_call.1} parent=1 // pred_fallthru
      _
    // Predicated region
    $region10: #{tpu_custom_call.1} parent=1 // pred_check
      _
    $region11: #{tpu_custom_call.1} parent=1 // pred_check_branch
      %38 = sbr.rel (0) target = $region13
    $region12: #{tpu_custom_call.1} parent=1 // pred_region
      _
    $region13: #{tpu_custom_call.1} parent=1 // pred_fallthru
      _
    // Predicated region
    $region14: #{tpu_custom_call.1} parent=1 // pred_check
      _
    $region15: #{tpu_custom_call.1} parent=1 // pred_check_branch
      %40 = sbr.rel (0) target = $region17
    $region16: #{tpu_custom_call.1} parent=1 // pred_region
      %s42 = ssub.s32 1024, 1024
      %43 = vsyncadd [#allocation6], %s42
      %s44 = sshll.u32 [#allocation7], 4
      %s45 = int_to_ptr.vmem [resolvable:$true] %s44
      %50 = dma.hbm_to_vmem [thread:$0]  %s3, 1024, %s45, [#allocation6], 64, 64, 4
    $region17: #{tpu_custom_call.1} parent=1 // pred_fallthru
      _
    // Predicated region
    $region18: #{tpu_custom_call.1} parent=1 // pred_check
      _
    $region19: #{tpu_custom_call.1} parent=1 // pred_check_branch
      %52 = sbr.rel (0) target = $region21
    $region20: #{tpu_custom_call.1} parent=1 // pred_region
      _
    $region21: #{tpu_custom_call.1} parent=1 // pred_fallthru
      _
    // Predicated region
    $region22: #{tpu_custom_call.1} parent=1 // pred_check
      _
    $region23: #{tpu_custom_call.1} parent=1 // pred_check_branch
      %54 = sbr.rel (0) target = $region25
    $region24: #{tpu_custom_call.1} parent=1 // pred_region
      %55 = dma.done [#allocation3], 128
    $region25: #{tpu_custom_call.1} parent=1 // pred_fallthru
      _
    // Predicated region
    $region26: #{tpu_custom_call.1} parent=1 // pred_check
      _
    $region27: #{tpu_custom_call.1} parent=1 // pred_check_branch
      %57 = sbr.rel (0) target = $region29
    $region28: #{tpu_custom_call.1} parent=1 // pred_region
      %58 = dma.done [#allocation6], 1024
    $region29: #{tpu_custom_call.1} parent=1 // pred_fallthru
      _
    // Predicated region
    $region30: #{tpu_custom_call.1} parent=1 // pred_check
      _
    $region31: #{tpu_custom_call.1} parent=1 // pred_check_branch
      %60 = sbr.rel (0) target = $region33
    $region32: #{tpu_custom_call.1} parent=1 // pred_region
      %61 = dma.done [#allocation6], 1024
    $region33: #{tpu_custom_call.1} parent=1 // pred_fallthru
      _
    %v63 = vld [vmem:[#allocation2] sm:$0xf]
    %v64 = vld [vmem:[#allocation2 + $0x4] sm:$0xf]
    %v65 = vunpack.c.l.bf16 %v63
    %v66 = vunpack.c.l.bf16 %v64
    %67 = vadd.xlane.f32.xlu0 %v65
    %v68 = vpop.xlane.xlu0 %67
    %69 = vadd.xlane.f32.xlu0 %v66
    %v70 = vpop.xlane.xlu0 %69
    %v71 = vmul.f32 %v68, 0.0078125
    %v72 = vmul.f32 %v70, 0.0078125
    %v73 = vmul.f32 %v65, %v65
    %v74 = vmul.f32 %v66, %v66
    %75 = vadd.xlane.f32.xlu0 %v73
    %v76 = vpop.xlane.xlu0 %75
    %77 = vadd.xlane.f32.xlu0 %v74
    %v78 = vpop.xlane.xlu0 %77
    %v79 = vmul.f32 %v76, 0.0078125
    %v80 = vmul.f32 %v78, 0.0078125
    %v81 = vmul.f32 %v71, %v71
    %v82 = vmul.f32 %v72, %v72
    %v83 = vsub.f32 %v79, %v81
    %v84 = vsub.f32 %v80, %v82
    %v85 = vmax.f32 %v83, 0.0
    %v86 = vmax.f32 %v84, 0.0
    %v87 = vsub.f32 %v65, %v71
    %v88 = vsub.f32 %v66, %v72
    %v89 = vadd.f32 %v85, 1e-06
    %v90 = vadd.f32 %v86, 1e-06
    %v91 = vrsqrt.pop %v89
    %v92 = vrsqrt.pop %v90
    %v93 = vmul.f32 %v87, %v91
    %v94 = vmul.f32 %v88, %v92
    %v95 = vpack.c.bf16 %v94, %v93
    %v96 = vld [vmem:[#allocation5] sm:$0xf]
    %v97 = vld [vmem:[#allocation5 + $0x4] sm:$0xf]
    %v98 = vld [vmem:[#allocation5 + $0x8] sm:$0xf]
    %v99 = vld [vmem:[#allocation5 + $0xc] sm:$0xf]
    %v100 = vld [vmem:[#allocation5 + $0x10] sm:$0xf]
    %v101 = vld [vmem:[#allocation5 + $0x14] sm:$0xf]
    %v102 = vld [vmem:[#allocation5 + $0x18] sm:$0xf]
    %v103 = vld [vmem:[#allocation5 + $0x1c] sm:$0xf]
    %v104 = vld [vmem:[#allocation5 + $0x20] sm:$0xf]
    %v105 = vld [vmem:[#allocation5 + $0x24] sm:$0xf]
    %v106 = vld [vmem:[#allocation5 + $0x28] sm:$0xf]
    %v107 = vld [vmem:[#allocation5 + $0x2c] sm:$0xf]
    %v108 = vld [vmem:[#allocation5 + $0x30] sm:$0xf]
    %v109 = vld [vmem:[#allocation5 + $0x34] sm:$0xf]
    %v110 = vld [vmem:[#allocation5 + $0x38] sm:$0xf]
    %v111 = vld [vmem:[#allocation5 + $0x3c] sm:$0xf]
    %v112 = vld [vmem:[%s2] sm:$0x1]
    %v114 = vlaneseq
    %v115 = vshrl.u32 %v114, 7
    %v116 = vsub.s32 0, %v115
    %v117 = vrot.slane %v112, %v116
    %v135 = vunpack.c.l.b16 %v96
    %v136 = vunpack.c.l.b16 %v97
    %v137 = vunpack.c.l.b16 %v98
    %v138 = vunpack.c.l.b16 %v99
    %v139 = vunpack.c.l.b16 %v100
    %v140 = vunpack.c.l.b16 %v101
    %v141 = vunpack.c.l.b16 %v102
    %v142 = vunpack.c.l.b16 %v103
    %v143 = vunpack.c.l.b16 %v104
    %v144 = vunpack.c.l.b16 %v105
    %v145 = vunpack.c.l.b16 %v106
    %v146 = vunpack.c.l.b16 %v107
    %v147 = vunpack.c.l.b16 %v108
    %v148 = vunpack.c.l.b16 %v109
    %v149 = vunpack.c.l.b16 %v110
    %v150 = vunpack.c.l.b16 %v111
    %v151 = vpack.c.b16 %v136, %v135
    %v152 = vpack.c.b16 %v138, %v137
    %v153 = vpack.c.b16 %v140, %v139
    %v154 = vpack.c.b16 %v142, %v141
    %v155 = vpack.c.b16 %v144, %v143
    %v156 = vpack.c.b16 %v146, %v145
    %v157 = vpack.c.b16 %v148, %v147
    %v158 = vpack.c.b16 %v150, %v149
    %167 = vmatprep.subr.bf16.mxu0 0
    %168 = vmatpush1.bf16.msra.mxu0 %v151
    %169 = vmatprep.subr.bf16.mxu0 0
    %170 = vmatpush1.bf16.msra.mxu0 %v152
    %171 = vmatprep.subr.bf16.mxu0 0
    %172 = vmatpush1.bf16.msra.mxu0 %v153
    %173 = vmatprep.subr.bf16.mxu0 0
    %174 = vmatpush1.bf16.msra.mxu0 %v154
    %175 = vmatprep.subr.bf16.mxu0 0
    %176 = vmatpush1.bf16.msra.mxu0 %v155
    %177 = vmatprep.subr.bf16.mxu0 0
    %178 = vmatpush1.bf16.msra.mxu0 %v156
    %179 = vmatprep.subr.bf16.mxu0 0
    %180 = vmatpush1.bf16.msra.mxu0 %v157
    %181 = vmatprep.subr.bf16.mxu0 0
    %182 = vmatpush1.bf16.msra.mxu0 %v158
    %183 = vmatprep.subr.bf16.mxu0 0
    %184 = vmatpush1.bf16.msra.mxu0 0
    %185 = vmatprep.subr.bf16.mxu0 0
    %186 = vmatpush1.bf16.msra.mxu0 0
    %187 = vmatprep.subr.bf16.mxu0 0
    %188 = vmatpush1.bf16.msra.mxu0 0
    %189 = vmatprep.subr.bf16.mxu0 0
    %190 = vmatpush1.bf16.msra.mxu0 0
    %191 = vmatprep.subr.bf16.mxu0 0
    %192 = vmatpush1.bf16.msra.mxu0 0
    %193 = vmatprep.subr.bf16.mxu0 0
    %194 = vmatpush1.bf16.msra.mxu0 0
    %195 = vmatprep.subr.bf16.mxu0 0
    %196 = vmatpush1.bf16.msra.mxu0 0
    %197 = vmatprep.subr.bf16.mxu0 0
    %198 = vmatpush1.bf16.msra.mxu0 0
    %199 = vmatprep.mubr.bf16.mxu0 0
    %200 = vmatmul.mubr.bf16.gmra.mrb[0].mxu0 %v95
    %v201 = vpop.f32.mrb[0].mxu0
    %v202 = vadd.f32 %v117, %v201
    %v203 = vpop.f32.mrb[0].mxu0
    %v204 = vpop.f32.mrb[0].mxu0
    %v205 = vadd.f32 %v117, %v204
    %v206 = vpop.f32.mrb[0].mxu0
    %207 = vdwg.mxu0
    %v208 = vmax.f32 %v202, 0.0
    %v209 = vmax.f32 %v205, 0.0
    %v210 = vpack.c.bf16 %v209, %v208
    %v211 = vld [vmem:[#allocation7] sm:$0xf]
    %v212 = vld [vmem:[#allocation7 + $0x4] sm:$0xf]
    %v213 = vld [vmem:[#allocation7 + $0x8] sm:$0xf]
    %v214 = vld [vmem:[#allocation7 + $0xc] sm:$0xf]
    %v215 = vld [vmem:[#allocation7 + $0x10] sm:$0xf]
    %v216 = vld [vmem:[#allocation7 + $0x14] sm:$0xf]
    %v217 = vld [vmem:[#allocation7 + $0x18] sm:$0xf]
    %v218 = vld [vmem:[#allocation7 + $0x1c] sm:$0xf]
    %v219 = vld [vmem:[#allocation7 + $0x20] sm:$0xf]
    %v220 = vld [vmem:[#allocation7 + $0x24] sm:$0xf]
    %v221 = vld [vmem:[#allocation7 + $0x28] sm:$0xf]
    %v222 = vld [vmem:[#allocation7 + $0x2c] sm:$0xf]
    %v223 = vld [vmem:[#allocation7 + $0x30] sm:$0xf]
    %v224 = vld [vmem:[#allocation7 + $0x34] sm:$0xf]
    %v225 = vld [vmem:[#allocation7 + $0x38] sm:$0xf]
    %v226 = vld [vmem:[#allocation7 + $0x3c] sm:$0xf]
    %v227 = vld [vmem:[%s4] sm:$0x1]
    %v229 = vlaneseq
    %v230 = vshrl.u32 %v229, 7
    %v231 = vsub.s32 0, %v230
    %v232 = vrot.slane %v227, %v231
    %v250 = vunpack.c.l.b16 %v211
    %v251 = vunpack.c.l.b16 %v212
    %v252 = vunpack.c.l.b16 %v213
    %v253 = vunpack.c.l.b16 %v214
    %v254 = vunpack.c.l.b16 %v215
    %v255 = vunpack.c.l.b16 %v216
    %v256 = vunpack.c.l.b16 %v217
    %v257 = vunpack.c.l.b16 %v218
    %v258 = vunpack.c.l.b16 %v219
    %v259 = vunpack.c.l.b16 %v220
    %v260 = vunpack.c.l.b16 %v221
    %v261 = vunpack.c.l.b16 %v222
    %v262 = vunpack.c.l.b16 %v223
    %v263 = vunpack.c.l.b16 %v224
    %v264 = vunpack.c.l.b16 %v225
    %v265 = vunpack.c.l.b16 %v226
    %v266 = vpack.c.b16 %v251, %v250
    %v267 = vpack.c.b16 %v253, %v252
    %v268 = vpack.c.b16 %v255, %v254
    %v269 = vpack.c.b16 %v257, %v256
    %v270 = vpack.c.b16 %v259, %v258
    %v271 = vpack.c.b16 %v261, %v260
    %v272 = vpack.c.b16 %v263, %v262
    %v273 = vpack.c.b16 %v265, %v264
    %282 = vmatprep.subr.bf16.mxu0 0
    %283 = vmatpush1.bf16.msra.mxu0 %v266
    %284 = vmatprep.subr.bf16.mxu0 0
    %285 = vmatpush1.bf16.msra.mxu0 %v267
    %286 = vmatprep.subr.bf16.mxu0 0
    %287 = vmatpush1.bf16.msra.mxu0 %v268
    %288 = vmatprep.subr.bf16.mxu0 0
    %289 = vmatpush1.bf16.msra.mxu0 %v269
    %290 = vmatprep.subr.bf16.mxu0 0
    %291 = vmatpush1.bf16.msra.mxu0 %v270
    %292 = vmatprep.subr.bf16.mxu0 0
    %293 = vmatpush1.bf16.msra.mxu0 %v271
    %294 = vmatprep.subr.bf16.mxu0 0
    %295 = vmatpush1.bf16.msra.mxu0 %v272
    %296 = vmatprep.subr.bf16.mxu0 0
    %297 = vmatpush1.bf16.msra.mxu0 %v273
    %298 = vmatprep.subr.bf16.mxu0 0
    %299 = vmatpush1.bf16.msra.mxu0 0
    %300 = vmatprep.subr.bf16.mxu0 0
    %301 = vmatpush1.bf16.msra.mxu0 0
    %302 = vmatprep.subr.bf16.mxu0 0
    %303 = vmatpush1.bf16.msra.mxu0 0
    %304 = vmatprep.subr.bf16.mxu0 0
    %305 = vmatpush1.bf16.msra.mxu0 0
    %306 = vmatprep.subr.bf16.mxu0 0
    %307 = vmatpush1.bf16.msra.mxu0 0
    %308 = vmatprep.subr.bf16.mxu0 0
    %309 = vmatpush1.bf16.msra.mxu0 0
    %310 = vmatprep.subr.bf16.mxu0 0
    %311 = vmatpush1.bf16.msra.mxu0 0
    %312 = vmatprep.subr.bf16.mxu0 0
    %313 = vmatpush1.bf16.msra.mxu0 0
    %314 = vmatprep.mubr.bf16.mxu0 0
    %315 = vmatmul.mubr.bf16.gmra.mrb[0].mxu0 %v210
    %v316 = vpop.f32.mrb[0].mxu0
    %v317 = vadd.f32 %v232, %v316
    %v318 = vpop.f32.mrb[0].mxu0
    %v319 = vpop.f32.mrb[0].mxu0
    %v320 = vadd.f32 %v232, %v319
    %v321 = vpop.f32.mrb[0].mxu0
    %322 = vdwg.mxu0
    %v323 = vadd.f32 %v317, %v65
    %v324 = vadd.f32 %v320, %v66
    %v325 = vpack.c.bf16 %v324, %v323
    %v327 = vunpack.c.l.b16 %v325
    %v328 = vunpack.c.h.b16 %v325
    %v329 = vpack.c.b16 %v327, %v327
    %v330 = vpack.c.b16 %v328, %v328
    %333 = vst [vmem:[#allocation8] sm:$0xf] %v329
    %334 = vst [vmem:[#allocation8 + $0x4] sm:$0xf] %v330
    // Predicated region
    $region34: #{tpu_custom_call.1} parent=1 // pred_check
      _
    $region35: #{tpu_custom_call.1} parent=1 // pred_check_branch
      %336 = sbr.rel (0) target = $region37
    $region36: #{tpu_custom_call.1} parent=1 // pred_region
      %s338 = ssub.s32 128, 128
      %339 = vsyncadd [#allocation4], %s338
      %s340 = sshll.u32 [#allocation8], 4
      %s341 = int_to_ptr.vmem [resolvable:$true] %s340
      %346 = dma.vmem_to_hbm [thread:$0]  %s341, 128, %s5, [#allocation4], 64, 64, 4
    $region37: #{tpu_custom_call.1} parent=1 // pred_fallthru
      _
    // Predicated region
    $region38: #{tpu_custom_call.1} parent=1 // pred_check
      _
    $region39: #{tpu_custom_call.1} parent=1 // pred_check_branch
      %348 = sbr.rel (0) target = $region41
    $region40: #{tpu_custom_call.1} parent=1 // pred_region
      %349 = dma.done [#allocation4], 128
    $region41: #{tpu_custom_call.1} parent=1 // pred_fallthru
      _
    %350 = vsyncpa [#allocation3], 1
    %351 = vsyncpa [#allocation6], 1
    %352 = vsyncpa [#allocation4], 1

</llo_original>
